<compile_context>
chip_gen: v5e
topology: v5e:2x2
jax: 0.10.0
libtpu: 0.0.40
codegen_flags: <defaults>
</compile_context>

<pallas_src>
import jax
import jax.numpy as jnp
from jax.experimental import pallas as pl
from jax.experimental.pallas import tpu as pltpu


def _ranking_score_kernel(x_ref, w1_ref, b1_ref, w2_ref, b2_ref, o_ref):
    # x_ref : (bm, 2F) bf16    w1_ref: (2F, F) bf16    b1_ref: (1, F) f32
    # w2_ref: (1, F)   f32     b2_ref: (1, 1)  f32 (SMEM scalar)
    # o_ref : (1, bm)  f32  -- lane-dense row of scores for this batch tile
    # fc_1 + ReLU: bf16 MXU matmul with f32 accumulation, then f32 bias + VPU max.
    h = jnp.dot(x_ref[...], w1_ref[...], preferred_element_type=jnp.float32)
    h = jnp.maximum(h + b1_ref[...], 0.0)
    # fc_2 in transposed orientation: (1, F) . (bm, F)^T -> (1, bm) lane-dense result
    # (avoids the (bm, F) @ (F, 1) column output and its masked, lane-width-1 stores).
    out = jax.lax.dot_general(
        w2_ref[...], h,
        dimension_numbers=(((1,), (1,)), ((), ())),
        preferred_element_type=jnp.float32,
    )
    o_ref[...] = (out + b2_ref[0, 0]).astype(o_ref.dtype)


def _round_up(v: int, m: int) -> int:
    return (v + m - 1) // m * m


def _choose_block_m(batch: int, two_f: int, f: int, resident_weight_bytes: int) -> int:
    """Batch tile heuristic: 2x double-buffered bf16 x tile + f32 intermediate h must
    fit a conservative VMEM budget after subtracting the resident weights; multiple of
    128 (lane-dense output tiling), capped at 8192 rows and at the padded batch."""
    x_row_bytes = two_f * 2            # bf16 x tile row
    h_row_bytes = f * 4                # f32 intermediate row
    budget = max(4 * 1024 * 1024, 28 * 1024 * 1024 - resident_weight_bytes)
    bm = budget // (2 * x_row_bytes + h_row_bytes)
    bm = max(128, min(8192, (bm // 128) * 128))
    return min(bm, _round_up(batch, 128))


def ranking_score_net(x, w1, b1, w2, b2, *, block_m=None,
                      compute_dtype=jnp.bfloat16,
                      vmem_limit_bytes=48 * 1024 * 1024):
    """x: (B, 2F) -> (B, 1) float32 scores.

    Weights are in (in_features, out_features) layout (PyTorch nn.Linear stores
    (out, in); transpose before calling).
    """
    B, two_f = x.shape
    assert w1.shape[0] == two_f
    F = w1.shape[1]

    # Bandwidth-critical operands in bf16; everything after the first matmul is f32.
    x_c = x.astype(compute_dtype)
    w1_c = w1.astype(compute_dtype)
    b1_2d = b1.reshape(1, F).astype(jnp.float32)
    w2_row = w2.reshape(1, F).astype(jnp.float32)   # (F, 1) -> lane-dense (1, F) row
    b2_2d = b2.reshape(1, 1).astype(jnp.float32)

    # Constant-index weight blocks: single-buffer them only when big enough to matter
    # (v7x has just 64 MiB VMEM); small weights keep the default, battle-tested path.
    w1_bytes = two_f * F * jnp.dtype(compute_dtype).itemsize
    single_buffer_weights = 2 * w1_bytes > 8 * 1024 * 1024
    weight_kwargs = dict(pipeline_mode=pl.Buffered(1)) if single_buffer_weights else {}

    if block_m is None:
        block_m = _choose_block_m(
            B, two_f, F, w1_bytes * (1 if single_buffer_weights else 2))
    else:
        assert block_m > 0 and block_m % 128 == 0, "block_m must be a multiple of 128"
        block_m = min(block_m, _round_up(B, 128))

    # Pad the batch up to the tile size instead of requiring B % block_m == 0.
    B_pad = _round_up(B, block_m)
    if B_pad != B:
        x_c = jnp.pad(x_c, ((0, B_pad - B), (0, 0)))
    grid = (B_pad // block_m,)

    out_row = pl.pallas_call(
        _ranking_score_kernel,
        out_shape=jax.ShapeDtypeStruct((1, B_pad), jnp.float32),
        grid_spec=pltpu.PrefetchScalarGridSpec(
            num_scalar_prefetch=0,
            grid=grid,
            in_specs=[
                pl.BlockSpec((block_m, two_f), lambda i: (i, 0)),              # x tile (pipelined)
                pl.BlockSpec((two_f, F), lambda i: (0, 0), **weight_kwargs),   # W1 (resident)
                pl.BlockSpec((1, F), lambda i: (0, 0), **weight_kwargs),       # b1
                pl.BlockSpec((1, F), lambda i: (0, 0), **weight_kwargs),       # w2 row
                pl.BlockSpec(memory_space=pltpu.SMEM),                         # b2 scalar (SMEM)
            ],
            out_specs=pl.BlockSpec((1, block_m), lambda i: (0, i)),            # lane-dense scores
        ),
        compiler_params=pltpu.CompilerParams(
            dimension_semantics=("parallel",),   # megacore: batch tiles shard across TCs
            vmem_limit_bytes=vmem_limit_bytes,
        ),
    )(x_c, w1_c, b1_2d, w2_row, b2_2d)

    return out_row[0, :B].reshape(B, 1)


def init_params(key, feature_length):
    """Deterministic init mimicking torch.nn.Linear default (U(-1/sqrt(in), 1/sqrt(in)))."""
    k1, k2, k3, k4 = jax.random.split(key, 4)
    in1 = feature_length * 2
    bound1 = 1.0 / jnp.sqrt(in1)
    w1 = jax.random.uniform(k1, (in1, feature_length), jnp.float32, -bound1, bound1)
    b1 = jax.random.uniform(k2, (feature_length,), jnp.float32, -bound1, bound1)
    in2 = feature_length
    bound2 = 1.0 / jnp.sqrt(in2)
    w2 = jax.random.uniform(k3, (in2, 1), jnp.float32, -bound2, bound2)
    b2 = jax.random.uniform(k4, (1,), jnp.float32, -bound2, bound2)
    return w1, b1, w2, b2


if __name__ == "__main__":
    feature_length = 128
    batch = 300          # deliberately not a multiple of the tile -> exercises padding path

    key = jax.random.PRNGKey(0)
    k_x, k_p = jax.random.split(key)
    x = jax.random.normal(k_x, (batch, feature_length * 2), jnp.float32)
    w1, b1, w2, b2 = init_params(k_p, feature_length)

    # Small explicit tile so the toy problem still runs a multi-step, pipelined grid
    # (padded batch 384 -> grid of 3 steps); production sizes use the VMEM heuristic.
    out = ranking_score_net(x, w1, b1, w2, b2, block_m=128)
    out = jax.block_until_ready(out)

    # Pure-JAX f32 reference (PyTorch semantics). Kernel reads bf16 x/W1, so loose tol.
    ref = jnp.maximum(x @ w1 + b1, 0.0) @ w2 + b2
    assert out.shape == (batch, 1)
    max_err = float(jnp.max(jnp.abs(out - ref)))
    assert jnp.allclose(out, ref, atol=2e-2, rtol=2e-2), f"max abs err {max_err}"

    print("KERNEL_OK")
</pallas_src>

<mosaic_0001>
module attributes {stable_mosaic.version = 11 : i64} {
  func.func @_ranking_score_kernel(%arg0: i32, %arg1: memref<128x256xbf16, #tpu.memory_space<vmem>>, %arg2: memref<256x128xbf16, #tpu.memory_space<vmem>>, %arg3: memref<1x128xf32, #tpu.memory_space<vmem>>, %arg4: memref<1x128xf32, #tpu.memory_space<vmem>>, %arg5: memref<1x1xf32, #tpu.memory_space<smem>>, %arg6: memref<1x128xf32, #tpu.memory_space<vmem>>) attributes {dimension_semantics = [#tpu.dimension_semantics<parallel>], iteration_bounds = array<i64: 3>, scalar_prefetch = 0 : i64, scratch_operands = 0 : i64, tpu.core_type = #tpu.core_type<tc>, window_params = [{transform_indices = @transform_0, window_bounds = array<i64: 128, 256>}, {pipeline_mode = #tpu.pipeline_mode<synchronous>, transform_indices = @transform_1, window_bounds = array<i64: 256, 128>}, {pipeline_mode = #tpu.pipeline_mode<synchronous>, transform_indices = @transform_2, window_bounds = array<i64: 1, 128>}, {pipeline_mode = #tpu.pipeline_mode<synchronous>, transform_indices = @transform_3, window_bounds = array<i64: 1, 128>}, {transform_indices = @transform_4, window_bounds = array<i64: 1, 1>}, {transform_indices = @transform_5, window_bounds = array<i64: 1, 128>}]} {
    %c0 = arith.constant 0 : index
    %c0_0 = arith.constant 0 : index
    %0 = vector.load %arg1[%c0, %c0_0] : memref<128x256xbf16, #tpu.memory_space<vmem>>, vector<128x256xbf16>
    %c0_1 = arith.constant 0 : index
    %c0_2 = arith.constant 0 : index
    %1 = vector.load %arg2[%c0_1, %c0_2] : memref<256x128xbf16, #tpu.memory_space<vmem>>, vector<256x128xbf16>
    %cst = arith.constant dense<0.000000e+00> : vector<128x128xf32>
    %2 = tpu.matmul %0, %1, %cst {dimension_numbers = #tpu.dot_dimension_numbers<[1], [0], [0], [1], [0, 0, 1, 1], [], []>} : vector<128x256xbf16>, vector<256x128xbf16>, vector<128x128xf32> -> vector<128x128xf32>
    %c0_3 = arith.constant 0 : index
    %c0_4 = arith.constant 0 : index
    %3 = vector.load %arg3[%c0_3, %c0_4] : memref<1x128xf32, #tpu.memory_space<vmem>>, vector<1x128xf32>
    %4 = vector.broadcast %3 : vector<1x128xf32> to vector<128x128xf32>
    %5 = arith.addf %2, %4 : vector<128x128xf32>
    %cst_5 = arith.constant 0.000000e+00 : f32
    %6 = vector.broadcast %cst_5 : f32 to vector<128x128xf32>
    %7 = arith.maximumf %5, %6 : vector<128x128xf32>
    %c0_6 = arith.constant 0 : index
    %c0_7 = arith.constant 0 : index
    %8 = vector.load %arg4[%c0_6, %c0_7] : memref<1x128xf32, #tpu.memory_space<vmem>>, vector<1x128xf32>
    %cst_8 = arith.constant dense<0.000000e+00> : vector<1x128xf32>
    %9 = tpu.matmul %8, %7, %cst_8 {dimension_numbers = #tpu.dot_dimension_numbers<[1], [1], [0], [0], [0, 0, 1, 0], [], []>} : vector<1x128xf32>, vector<128x128xf32>, vector<1x128xf32> -> vector<1x128xf32>
    %c0_9 = arith.constant 0 : index
    %c0_10 = arith.constant 0 : index
    %10 = memref.load %arg5[%c0_9, %c0_10] : memref<1x1xf32, #tpu.memory_space<smem>>
    %11 = vector.broadcast %10 : f32 to vector<1x128xf32>
    %12 = arith.addf %9, %11 : vector<1x128xf32>
    %c0_11 = arith.constant 0 : index
    %c0_12 = arith.constant 0 : index
    %13 = vector.load %arg6[%c0_11, %c0_12] : memref<1x128xf32, #tpu.memory_space<vmem>>, vector<1x128xf32>
    tpu.vector_store %arg6[%c0_11, %c0_12], %12 {strides = array<i32>} : memref<1x128xf32, #tpu.memory_space<vmem>>, vector<1x128xf32>,
    return
  }
  func.func @transform_0(%arg0: i32) -> (i32, i32) {
    %c0_i32 = arith.constant 0 : i32
    %c0_i32_0 = arith.constant 0 : i32
    return %arg0, %c0_i32 : i32, i32
  }
  func.func @transform_1(%arg0: i32) -> (i32, i32) {
    %c0_i32 = arith.constant 0 : i32
    %c0_i32_0 = arith.constant 0 : i32
    %c0_i32_1 = arith.constant 0 : i32
    return %c0_i32, %c0_i32_0 : i32, i32
  }
  func.func @transform_2(%arg0: i32) -> (i32, i32) {
    %c0_i32 = arith.constant 0 : i32
    %c0_i32_0 = arith.constant 0 : i32
    %c0_i32_1 = arith.constant 0 : i32
    return %c0_i32, %c0_i32_0 : i32, i32
  }
  func.func @transform_3(%arg0: i32) -> (i32, i32) {
    %c0_i32 = arith.constant 0 : i32
    %c0_i32_0 = arith.constant 0 : i32
    %c0_i32_1 = arith.constant 0 : i32
    return %c0_i32, %c0_i32_0 : i32, i32
  }
  func.func @transform_4(%arg0: i32) -> (i32, i32) {
    %c0_i32 = arith.constant 0 : i32
    %c0_i32_0 = arith.constant 0 : i32
    %c0_i32_1 = arith.constant 0 : i32
    return %c0_i32, %c0_i32_0 : i32, i32
  }
  func.func @transform_5(%arg0: i32) -> (i32, i32) {
    %c0_i32 = arith.constant 0 : i32
    %c0_i32_0 = arith.constant 0 : i32
    return %c0_i32, %arg0 : i32, i32
  }
}

</mosaic_0001>

<llo_original>
// kernel: tpu_custom_call.1
$region0: #{tpu_custom_call.1}
  #allocation0 [shape = 'u32[]', space=smem, size = 0x4, offset = 0x4, fixed_abs, tag = 'smem constant byte address 0x4 - core index']
  #allocation1 [shape = 'u32[72,128]{1,0:T(1,128)}', space=vmem, size = 0x9000, scoped, tag = 'internal scratch']
  #allocation2 [shape = 'f32[1,1]{1,0:T(1,128)S(6)}', space=smem, size = 0x200, scoped, tag = 'scoped memory for tpu_custom_call.1']
  %s0 = inlined_call_operand.hbm [shape: bf16[384,256], index: 0, kind: input, shape index: {}]
  %s1 = inlined_call_operand.hbm [shape: bf16[256,128], index: 1, kind: input, shape index: {}]
  %s2 = inlined_call_operand.vmem [shape: f32[1,128], index: 2, kind: input, shape index: {}]
  %s3 = inlined_call_operand.vmem [shape: f32[1,128], index: 3, kind: input, shape index: {}]
  %s4 = inlined_call_operand.<no memory space> [shape: f32[1,1], index: 4, kind: input, shape index: {}]
  %s5 = inlined_call_operand.hbm [shape: f32[1,384], index: 5, kind: output, shape index: {}]
  %s6 = sld [smem:[#allocation0]]
  $region61: #{tpu_custom_call.1} parent=0
    _
  %s8 = ssub.s32 1, %s6
  %s9 = scalar_select 0, %s8, %s6
  %10 = sst [smem:[#allocation2]] %s4
  $region1: #{tpu_custom_call.1} parent=0
    #allocation3 [shape = 'u8[131072]{0}', space=vmem, size = 0x20000, scoped, tag = 'input window, operand 0']
    #allocation4 [shape = 's32[2]{0}', space=sflag, size = 0x8, scoped, tag = 'scoped memory for tpu_custom_call.1']
    #allocation5 [shape = 's32[2]{0}', space=sflag, size = 0x8, scoped, tag = 'scoped memory for tpu_custom_call.1']
    #allocation6 [shape = 'u8[65536]{0}', space=vmem, size = 0x10000, scoped, tag = 'input window, operand 1, single buffered']
    #allocation7 [shape = 's32[1]{0}', space=sflag, size = 0x4, scoped, tag = 'scoped memory for tpu_custom_call.1']
    #allocation8 [shape = 'u8[1024]{0}', space=vmem, size = 0x400, scoped, tag = 'output window, operand 0']
    %11 = vsyncpa [#allocation4], 0
    %s12 = scalar_lea.sflag [#allocation4], 1
    %13 = vsyncpa %s12, 0
    %14 = vsyncpa [#allocation7], 0
    %15 = vsyncpa [#allocation5], 0
    %s16 = scalar_lea.sflag [#allocation5], 1
    %17 = vsyncpa %s16, 0
    loop: start=0, step=1, limit=5
    $region2: #{tpu_custom_call.1} parent=1 // loop_pre_header
      _
    $region3: #{tpu_custom_call.1} parent=1 // loop_header
      %s19 = sphi 0, %s23
      %p20 = scmp.ge.s32.totalorder %s19, 5
      %s29 = sphi 0, %s31
      %s32 = sphi 0, %s29
      %s33 = sphi 0, %s32
      %s49 = sphi 0, %s33
      %s53 = sphi 0, %s53
      %s55 = sphi 0, %s53
      %s56 = sphi 0, %s55
      %s70 = sphi 0, %s56
      %s74 = sphi 0, %s74
      %s76 = sphi 0, %s74
      %s77 = sphi 0, %s76
      %s91 = sphi 0, %s77
      %s95 = sphi 0, %s95
      %s97 = sphi 0, %s95
      %s98 = sphi 0, %s97
      %s112 = sphi 0, %s98
      %s116 = sphi 0, %s116
      %s118 = sphi 0, %s116
      %s119 = sphi 0, %s118
      %s133 = sphi 0, %s119
      %s139 = sphi 0, %s141
      %s142 = sphi 0, %s139
      %s143 = sphi 0, %s142
      %s159 = sphi 0, %s143
    $region4: #{tpu_custom_call.1} parent=1 // loop_header_branch
      %22 = sbr.rel (%p20) target = $region8
    $region5: #{tpu_custom_call.1} parent=1 // loop_body
      %s24 = ssub.s32 %s19, 1
      %s25 = ssub.s32 %s19, 2
      %s26 = sadd.s32 %s19, 1
      %s27 = ssub.s32 %s19, %s26
      %p28 = scmp.eq.s32.totalorder %s27, 0
      %s30 = sadd.s32 %s29, 1
      %s31 = scalar_select %p28, %s29, %s30
      %p34 = pneg %p28
      %p35 = scmp.eq.s32.totalorder %s19, 2
      %p36 = por %p34, %p35
      %p37 = scmp.ne.s32.totalorder %s29, %s32
      %p38 = scmp.eq.s32.totalorder %s19, 0
      %p39 = por %p37, %p38
      %p40 = scmp.ne.s32.totalorder %s29, %s32
      %p41 = scmp.eq.s32.totalorder %s24, 2
      %p42 = por %p40, %p41
      %p43 = scmp.ne.s32.totalorder %s32, %s33
      %p44 = scmp.eq.s32.totalorder %s24, 0
      %p45 = por %p43, %p44
      %p46 = scmp.ne.s32.totalorder %s32, %s33
      %p47 = scmp.eq.s32.totalorder %s25, 2
      %p48 = por %p46, %p47
      %p50 = scmp.ne.s32.totalorder %s33, %s49
      %p51 = scmp.eq.s32.totalorder %s25, 0
      %p52 = por %p50, %p51
      %s54 = sadd.s32 %s53, 1
      %p57 = scmp.eq.s32.totalorder %s19, 2
      %p58 = scmp.ne.s32.totalorder %s53, %s55
      %p59 = scmp.eq.s32.totalorder %s19, 0
      %p60 = por %p58, %p59
      %p61 = scmp.ne.s32.totalorder %s53, %s55
      %p62 = scmp.eq.s32.totalorder %s24, 2
      %p63 = por %p61, %p62
      %p64 = scmp.ne.s32.totalorder %s55, %s56
      %p65 = scmp.eq.s32.totalorder %s24, 0
      %p66 = por %p64, %p65
      %p67 = scmp.ne.s32.totalorder %s55, %s56
      %p68 = scmp.eq.s32.totalorder %s25, 2
      %p69 = por %p67, %p68
      %p71 = scmp.ne.s32.totalorder %s56, %s70
      %p72 = scmp.eq.s32.totalorder %s25, 0
      %p73 = por %p71, %p72
      %s75 = sadd.s32 %s74, 1
      %p78 = scmp.eq.s32.totalorder %s19, 2
      %p79 = scmp.ne.s32.totalorder %s74, %s76
      %p80 = scmp.eq.s32.totalorder %s19, 0
      %p81 = por %p79, %p80
      %p82 = scmp.ne.s32.totalorder %s74, %s76
      %p83 = scmp.eq.s32.totalorder %s24, 2
      %p84 = por %p82, %p83
      %p85 = scmp.ne.s32.totalorder %s76, %s77
      %p86 = scmp.eq.s32.totalorder %s24, 0
      %p87 = por %p85, %p86
      %p88 = scmp.ne.s32.totalorder %s76, %s77
      %p89 = scmp.eq.s32.totalorder %s25, 2
      %p90 = por %p88, %p89
      %p92 = scmp.ne.s32.totalorder %s77, %s91
      %p93 = scmp.eq.s32.totalorder %s25, 0
      %p94 = por %p92, %p93
      %s96 = sadd.s32 %s95, 1
      %p99 = scmp.eq.s32.totalorder %s19, 2
      %p100 = scmp.ne.s32.totalorder %s95, %s97
      %p101 = scmp.eq.s32.totalorder %s19, 0
      %p102 = por %p100, %p101
      %p103 = scmp.ne.s32.totalorder %s95, %s97
      %p104 = scmp.eq.s32.totalorder %s24, 2
      %p105 = por %p103, %p104
      %p106 = scmp.ne.s32.totalorder %s97, %s98
      %p107 = scmp.eq.s32.totalorder %s24, 0
      %p108 = por %p106, %p107
      %p109 = scmp.ne.s32.totalorder %s97, %s98
      %p110 = scmp.eq.s32.totalorder %s25, 2
      %p111 = por %p109, %p110
      %p113 = scmp.ne.s32.totalorder %s98, %s112
      %p114 = scmp.eq.s32.totalorder %s25, 0
      %p115 = por %p113, %p114
      %s117 = sadd.s32 %s116, 1
      %p120 = scmp.eq.s32.totalorder %s19, 2
      %p121 = scmp.ne.s32.totalorder %s116, %s118
      %p122 = scmp.eq.s32.totalorder %s19, 0
      %p123 = por %p121, %p122
      %p124 = scmp.ne.s32.totalorder %s116, %s118
      %p125 = scmp.eq.s32.totalorder %s24, 2
      %p126 = por %p124, %p125
      %p127 = scmp.ne.s32.totalorder %s118, %s119
      %p128 = scmp.eq.s32.totalorder %s24, 0
      %p129 = por %p127, %p128
      %p130 = scmp.ne.s32.totalorder %s118, %s119
      %p131 = scmp.eq.s32.totalorder %s25, 2
      %p132 = por %p130, %p131
      %p134 = scmp.ne.s32.totalorder %s119, %s133
      %p135 = scmp.eq.s32.totalorder %s25, 0
      %p136 = por %p134, %p135
      %s137 = ssub.s32 %s19, %s26
      %p138 = scmp.eq.s32.totalorder %s137, 0
      %s140 = sadd.s32 %s139, 1
      %s141 = scalar_select %p138, %s139, %s140
      %p144 = pneg %p138
      %p145 = scmp.eq.s32.totalorder %s19, 2
      %p146 = por %p144, %p145
      %p147 = scmp.ne.s32.totalorder %s139, %s142
      %p148 = scmp.eq.s32.totalorder %s19, 0
      %p149 = por %p147, %p148
      %p150 = scmp.ne.s32.totalorder %s139, %s142
      %p151 = scmp.eq.s32.totalorder %s24, 2
      %p152 = por %p150, %p151
      %p153 = scmp.ne.s32.totalorder %s142, %s143
      %p154 = scmp.eq.s32.totalorder %s24, 0
      %p155 = por %p153, %p154
      %p156 = scmp.ne.s32.totalorder %s142, %s143
      %p157 = scmp.eq.s32.totalorder %s25, 2
      %p158 = por %p156, %p157
      %p160 = scmp.ne.s32.totalorder %s143, %s159
      %p161 = scmp.eq.s32.totalorder %s25, 0
      %p162 = por %p160, %p161
      %p163 = scmp.le.s32.totalorder 1, %s19
      %p164 = scmp.lt.s32.totalorder %s19, 4
      %p165 = pnand %p163, %p164
      %p166 = pneg %p165
      // Predicated region
      $region9: #{tpu_custom_call.1} parent=5 // pred_check
        _
      $region10: #{tpu_custom_call.1} parent=5 // pred_check_branch
        %168 = sbr.rel (%p165) target = $region12
      $region11: #{tpu_custom_call.1} parent=5 // pred_region
        %s169 = ssub.s32 %s19, 1
        // Predicated region
        $region13: #{tpu_custom_call.1} parent=11 // pred_check
          %p170 = pneg %p66
        $region14: #{tpu_custom_call.1} parent=11 // pred_check_branch
          %172 = sbr.rel (%p170) target = $region16
        $region15: #{tpu_custom_call.1} parent=11 // pred_region
          %174 = vsyncadd [#allocation7], 0
          %s175 = sshll.u32 %s1, 4
          %s176 = int_to_ptr.hbm [resolvable:$true] %s175
          %s177 = sshll.u32 [#allocation6], 4
          %s178 = int_to_ptr.vmem [resolvable:$true] %s177
          %183 = dma.hbm_to_vmem [thread:$0]  %s176, 2048, %s178, [#allocation7], 64, 64, 4
        $region16: #{tpu_custom_call.1} parent=11 // pred_fallthru
          _
        // Predicated region
        $region17: #{tpu_custom_call.1} parent=11 // pred_check
          %p184 = pneg %p87
        $region18: #{tpu_custom_call.1} parent=11 // pred_check_branch
          %186 = sbr.rel (%p184) target = $region20
        $region19: #{tpu_custom_call.1} parent=11 // pred_region
          _
        $region20: #{tpu_custom_call.1} parent=11 // pred_fallthru
          _
        // Predicated region
        $region21: #{tpu_custom_call.1} parent=11 // pred_check
          %p187 = pneg %p108
        $region22: #{tpu_custom_call.1} parent=11 // pred_check_branch
          %189 = sbr.rel (%p187) target = $region24
        $region23: #{tpu_custom_call.1} parent=11 // pred_region
          _
        $region24: #{tpu_custom_call.1} parent=11 // pred_fallthru
          _
        // Predicated region
        $region25: #{tpu_custom_call.1} parent=11 // pred_check
          %p190 = pneg %p129
        $region26: #{tpu_custom_call.1} parent=11 // pred_check_branch
          %192 = sbr.rel (%p190) target = $region28
        $region27: #{tpu_custom_call.1} parent=11 // pred_region
          _
        $region28: #{tpu_custom_call.1} parent=11 // pred_fallthru
          _
      $region12: #{tpu_custom_call.1} parent=5 // pred_fallthru
        _
      %p193 = scmp.lt.s32.totalorder %s19, 3
      // Predicated region
      $region29: #{tpu_custom_call.1} parent=5 // pred_check
        %p194 = pneg %p193
      $region30: #{tpu_custom_call.1} parent=5 // pred_check_branch
        %196 = sbr.rel (%p194) target = $region32
      $region31: #{tpu_custom_call.1} parent=5 // pred_region
        // Predicated region
        $region33: #{tpu_custom_call.1} parent=31 // pred_check
          %p197 = pneg %p39
        $region34: #{tpu_custom_call.1} parent=31 // pred_check_branch
          %199 = sbr.rel (%p197) target = $region36
        $region35: #{tpu_custom_call.1} parent=31 // pred_region
          %s200 = sand.u32 %s29, 1
          %s201 = scalar_lea.sflag [#allocation4], %s200
          %s202 = sand.u32 %s29, 1
          %s203 = smul.addr %s202, 128
          %s204 = scalar_lea.vmem [#allocation3], %s203
          %s205 = smul.u32 16, %s19
          %207 = vsyncadd %s201, 0
          %s208 = smul.addr %s205, 2
          %s209 = smul.addr %s208, 4
          %s210 = scalar_lea.hbm %s0, %s209
          %s211 = sshll.u32 %s210, 4
          %s212 = int_to_ptr.hbm [resolvable:$true] %s211
          %s213 = sshll.u32 %s204, 4
          %s214 = int_to_ptr.vmem [resolvable:$true] %s213
          %219 = dma.hbm_to_vmem [thread:$0]  %s212, 2048, %s214, %s201, 128, 128, 8
        $region36: #{tpu_custom_call.1} parent=31 // pred_fallthru
          _
      $region32: #{tpu_custom_call.1} parent=5 // pred_fallthru
        _
      %p220 = scmp.le.s32.totalorder 1, %s19
      %p221 = scmp.lt.s32.totalorder %s19, 4
      %p222 = pnand %p220, %p221
      %p223 = pneg %p222
      // Predicated region
      $region37: #{tpu_custom_call.1} parent=5 // pred_check
        _
      $region38: #{tpu_custom_call.1} parent=5 // pred_check_branch
        %225 = sbr.rel (%p222) target = $region40
      $region39: #{tpu_custom_call.1} parent=5 // pred_region
        %s226 = ssub.s32 %s19, 1
        %s227 = sand.u32 %s32, 1
        %s228 = scalar_lea.sflag [#allocation4], %s227
        %s229 = sand.u32 %s32, 1
        %s230 = smul.addr %s229, 128
        %s231 = scalar_lea.vmem [#allocation3], %s230
        // Predicated region
        $region41: #{tpu_custom_call.1} parent=39 // pred_check
          %p232 = pneg %p45
        $region42: #{tpu_custom_call.1} parent=39 // pred_check_branch
          %234 = sbr.rel (%p232) target = $region44
        $region43: #{tpu_custom_call.1} parent=39 // pred_region
          %236 = dma.done %s228, 2048
        $region44: #{tpu_custom_call.1} parent=39 // pred_fallthru
          _
        // Predicated region
        $region45: #{tpu_custom_call.1} parent=39 // pred_check
          %p237 = pneg %p66
        $region46: #{tpu_custom_call.1} parent=39 // pred_check_branch
          %239 = sbr.rel (%p237) target = $region48
        $region47: #{tpu_custom_call.1} parent=39 // pred_region
          %241 = dma.done [#allocation7], 2048
        $region48: #{tpu_custom_call.1} parent=39 // pred_fallthru
          _
        %s242 = sand.u32 %s32, 1
        %s243 = scalar_lea.sflag [#allocation4], %s242
        %s244 = sand.u32 %s32, 1
        %s245 = smul.addr %s244, 128
        %s246 = scalar_lea.vmem [#allocation3], %s245
        %p247 = pneg %p45
        %p248 = pneg %p42
        %p249 = pneg %p66
        %p250 = pneg %p63
        %p251 = pneg %p87
        %p252 = pneg %p84
        %p253 = pneg %p108
        %p254 = pneg %p105
        %p255 = pneg %p129
        %p256 = pneg %p126
        %p257 = pneg %p155
        %p258 = pneg %p152
        %s259 = sand.u32 %s142, 1
        %s260 = scalar_lea.sflag [#allocation5], %s259
        %s261 = sand.u32 %s142, 1
        %s262 = scalar_lea.vmem [#allocation8], %s261
        %s263 = smul.u32 16, %s24
        %v264 = vld [vmem:[%s231] sm:$0xff]
        %v265 = vld [vmem:[%s231 + $0x8] sm:$0xff]
        %v266 = vld [vmem:[%s231 + $0x10] sm:$0xff]
        %v267 = vld [vmem:[%s231 + $0x18] sm:$0xff]
        %v268 = vld [vmem:[%s231 + $0x20] sm:$0xff]
        %v269 = vld [vmem:[%s231 + $0x28] sm:$0xff]
        %v270 = vld [vmem:[%s231 + $0x30] sm:$0xff]
        %v271 = vld [vmem:[%s231 + $0x38] sm:$0xff]
        %v272 = vld [vmem:[%s231 + $0x40] sm:$0xff]
        %v273 = vld [vmem:[%s231 + $0x48] sm:$0xff]
        %v274 = vld [vmem:[%s231 + $0x50] sm:$0xff]
        %v275 = vld [vmem:[%s231 + $0x58] sm:$0xff]
        %v276 = vld [vmem:[%s231 + $0x60] sm:$0xff]
        %v277 = vld [vmem:[%s231 + $0x68] sm:$0xff]
        %v278 = vld [vmem:[%s231 + $0x70] sm:$0xff]
        %v279 = vld [vmem:[%s231 + $0x78] sm:$0xff]
        %v280 = vld [vmem:[#allocation6] sm:$0xf]
        %v281 = vld [vmem:[#allocation6 + $0x4] sm:$0xf]
        %v282 = vld [vmem:[#allocation6 + $0x8] sm:$0xf]
        %v283 = vld [vmem:[#allocation6 + $0xc] sm:$0xf]
        %v284 = vld [vmem:[#allocation6 + $0x10] sm:$0xf]
        %v285 = vld [vmem:[#allocation6 + $0x14] sm:$0xf]
        %v286 = vld [vmem:[#allocation6 + $0x18] sm:$0xf]
        %v287 = vld [vmem:[#allocation6 + $0x1c] sm:$0xf]
        %v288 = vld [vmem:[#allocation6 + $0x20] sm:$0xf]
        %v289 = vld [vmem:[#allocation6 + $0x24] sm:$0xf]
        %v290 = vld [vmem:[#allocation6 + $0x28] sm:$0xf]
        %v291 = vld [vmem:[#allocation6 + $0x2c] sm:$0xf]
        %v292 = vld [vmem:[#allocation6 + $0x30] sm:$0xf]
        %v293 = vld [vmem:[#allocation6 + $0x34] sm:$0xf]
        %v294 = vld [vmem:[#allocation6 + $0x38] sm:$0xf]
        %v295 = vld [vmem:[#allocation6 + $0x3c] sm:$0xf]
        %v296 = vld [vmem:[#allocation6 + $0x40] sm:$0xf]
        %v297 = vld [vmem:[#allocation6 + $0x44] sm:$0xf]
        %v298 = vld [vmem:[#allocation6 + $0x48] sm:$0xf]
        %v299 = vld [vmem:[#allocation6 + $0x4c] sm:$0xf]
        %v300 = vld [vmem:[#allocation6 + $0x50] sm:$0xf]
        %v301 = vld [vmem:[#allocation6 + $0x54] sm:$0xf]
        %v302 = vld [vmem:[#allocation6 + $0x58] sm:$0xf]
        %v303 = vld [vmem:[#allocation6 + $0x5c] sm:$0xf]
        %v304 = vld [vmem:[#allocation6 + $0x60] sm:$0xf]
        %v305 = vld [vmem:[#allocation6 + $0x64] sm:$0xf]
        %v306 = vld [vmem:[#allocation6 + $0x68] sm:$0xf]
        %v307 = vld [vmem:[#allocation6 + $0x6c] sm:$0xf]
        %v308 = vld [vmem:[#allocation6 + $0x70] sm:$0xf]
        %v309 = vld [vmem:[#allocation6 + $0x74] sm:$0xf]
        %v310 = vld [vmem:[#allocation6 + $0x78] sm:$0xf]
        %v311 = vld [vmem:[#allocation6 + $0x7c] sm:$0xf]
        %v312 = vld [vmem:[%s2] sm:$0x1]
        %v314 = vperm.slane %v312, 0
        %v332 = vunpack.c.l.b16 %v264
        %v333 = vunpack.c.h.b16 %v264
        %v334 = vunpack.c.l.b16 %v265
        %v335 = vunpack.c.h.b16 %v265
        %v336 = vunpack.c.l.b16 %v266
        %v337 = vunpack.c.h.b16 %v266
        %v338 = vunpack.c.l.b16 %v267
        %v339 = vunpack.c.h.b16 %v267
        %v340 = vunpack.c.l.b16 %v268
        %v341 = vunpack.c.h.b16 %v268
        %v342 = vunpack.c.l.b16 %v269
        %v343 = vunpack.c.h.b16 %v269
        %v344 = vunpack.c.l.b16 %v270
        %v345 = vunpack.c.h.b16 %v270
        %v346 = vunpack.c.l.b16 %v271
        %v347 = vunpack.c.h.b16 %v271
        %v348 = vunpack.c.l.b16 %v272
        %v349 = vunpack.c.h.b16 %v272
        %v350 = vunpack.c.l.b16 %v273
        %v351 = vunpack.c.h.b16 %v273
        %v352 = vunpack.c.l.b16 %v274
        %v353 = vunpack.c.h.b16 %v274
        %v354 = vunpack.c.l.b16 %v275
        %v355 = vunpack.c.h.b16 %v275
        %v356 = vunpack.c.l.b16 %v276
        %v357 = vunpack.c.h.b16 %v276
        %v358 = vunpack.c.l.b16 %v277
        %v359 = vunpack.c.h.b16 %v277
        %v360 = vunpack.c.l.b16 %v278
        %v361 = vunpack.c.h.b16 %v278
        %v362 = vunpack.c.l.b16 %v279
        %v363 = vunpack.c.h.b16 %v279
        %v364 = vpack.c.b16 %v334, %v332
        %v365 = vpack.c.b16 %v335, %v333
        %v366 = vpack.c.b16 %v338, %v336
        %v367 = vpack.c.b16 %v339, %v337
        %v368 = vpack.c.b16 %v342, %v340
        %v369 = vpack.c.b16 %v343, %v341
        %v370 = vpack.c.b16 %v346, %v344
        %v371 = vpack.c.b16 %v347, %v345
        %v372 = vpack.c.b16 %v350, %v348
        %v373 = vpack.c.b16 %v351, %v349
        %v374 = vpack.c.b16 %v354, %v352
        %v375 = vpack.c.b16 %v355, %v353
        %v376 = vpack.c.b16 %v358, %v356
        %v377 = vpack.c.b16 %v359, %v357
        %v378 = vpack.c.b16 %v362, %v360
        %v379 = vpack.c.b16 %v363, %v361
        %v428 = vunpack.c.l.b16 %v280
        %v429 = vunpack.c.l.b16 %v281
        %v430 = vunpack.c.l.b16 %v282
        %v431 = vunpack.c.l.b16 %v283
        %v432 = vunpack.c.l.b16 %v284
        %v433 = vunpack.c.l.b16 %v285
        %v434 = vunpack.c.l.b16 %v286
        %v435 = vunpack.c.l.b16 %v287
        %v436 = vunpack.c.l.b16 %v288
        %v437 = vunpack.c.l.b16 %v289
        %v438 = vunpack.c.l.b16 %v290
        %v439 = vunpack.c.l.b16 %v291
        %v440 = vunpack.c.l.b16 %v292
        %v441 = vunpack.c.l.b16 %v293
        %v442 = vunpack.c.l.b16 %v294
        %v443 = vunpack.c.l.b16 %v295
        %v444 = vunpack.c.l.b16 %v296
        %v445 = vunpack.c.l.b16 %v297
        %v446 = vunpack.c.l.b16 %v298
        %v447 = vunpack.c.l.b16 %v299
        %v448 = vunpack.c.l.b16 %v300
        %v449 = vunpack.c.l.b16 %v301
        %v450 = vunpack.c.l.b16 %v302
        %v451 = vunpack.c.l.b16 %v303
        %v452 = vunpack.c.l.b16 %v304
        %v453 = vunpack.c.l.b16 %v305
        %v454 = vunpack.c.l.b16 %v306
        %v455 = vunpack.c.l.b16 %v307
        %v456 = vunpack.c.l.b16 %v308
        %v457 = vunpack.c.l.b16 %v309
        %v458 = vunpack.c.l.b16 %v310
        %v459 = vunpack.c.l.b16 %v311
        %v460 = vpack.c.b16 %v429, %v428
        %v461 = vpack.c.b16 %v431, %v430
        %v462 = vpack.c.b16 %v433, %v432
        %v463 = vpack.c.b16 %v435, %v434
        %v464 = vpack.c.b16 %v437, %v436
        %v465 = vpack.c.b16 %v439, %v438
        %v466 = vpack.c.b16 %v441, %v440
        %v467 = vpack.c.b16 %v443, %v442
        %v468 = vpack.c.b16 %v445, %v444
        %v469 = vpack.c.b16 %v447, %v446
        %v470 = vpack.c.b16 %v449, %v448
        %v471 = vpack.c.b16 %v451, %v450
        %v472 = vpack.c.b16 %v453, %v452
        %v473 = vpack.c.b16 %v455, %v454
        %v474 = vpack.c.b16 %v457, %v456
        %v475 = vpack.c.b16 %v459, %v458
        %492 = vmatpush.bf16.msra.mxu0 %v467
        %493 = vmatpush.bf16.msra.mxu0 %v466
        %494 = vmatpush.bf16.msra.mxu0 %v465
        %495 = vmatpush.bf16.msra.mxu0 %v464
        %496 = vmatpush.bf16.msra.mxu0 %v463
        %497 = vmatpush.bf16.msra.mxu0 %v462
        %498 = vmatpush.bf16.msra.mxu0 %v461
        %499 = vmatpush.bf16.msra.mxu0 %v460
        %500 = vmatmul.bf16.gmra.mxu0 %v364
        %v501 = vpop.f32.mrf.mxu0
        %v502 = vadd.f32 %v314, %v501
        %v503 = vpop.f32.mrf.mxu0
        %v504 = vadd.f32 %v314, %v503
        %505 = vmatmul.bf16.gmra.mxu0 %v366
        %v506 = vpop.f32.mrf.mxu0
        %v507 = vadd.f32 %v314, %v506
        %v508 = vpop.f32.mrf.mxu0
        %v509 = vadd.f32 %v314, %v508
        %510 = vmatmul.bf16.gmra.mxu0 %v368
        %v511 = vpop.f32.mrf.mxu0
        %v512 = vadd.f32 %v314, %v511
        %v513 = vpop.f32.mrf.mxu0
        %v514 = vadd.f32 %v314, %v513
        %515 = vmatmul.bf16.gmra.mxu0 %v370
        %v516 = vpop.f32.mrf.mxu0
        %v517 = vadd.f32 %v314, %v516
        %v518 = vpop.f32.mrf.mxu0
        %v519 = vadd.f32 %v314, %v518
        %520 = vmatmul.bf16.gmra.mxu0 %v372
        %v521 = vpop.f32.mrf.mxu0
        %v522 = vadd.f32 %v314, %v521
        %v523 = vpop.f32.mrf.mxu0
        %v524 = vadd.f32 %v314, %v523
        %525 = vmatmul.bf16.gmra.mxu0 %v374
        %v526 = vpop.f32.mrf.mxu0
        %v527 = vadd.f32 %v314, %v526
        %v528 = vpop.f32.mrf.mxu0
        %v529 = vadd.f32 %v314, %v528
        %530 = vmatmul.bf16.gmra.mxu0 %v376
        %v531 = vpop.f32.mrf.mxu0
        %v532 = vadd.f32 %v314, %v531
        %v533 = vpop.f32.mrf.mxu0
        %v534 = vadd.f32 %v314, %v533
        %535 = vmatmul.bf16.gmra.mxu0 %v378
        %v536 = vpop.f32.mrf.mxu0
        %v537 = vadd.f32 %v314, %v536
        %v538 = vpop.f32.mrf.mxu0
        %v539 = vadd.f32 %v314, %v538
        %540 = vdwg.mxu0
        %541 = vmatpush.bf16.msra.mxu0 %v475
        %542 = vmatpush.bf16.msra.mxu0 %v474
        %543 = vmatpush.bf16.msra.mxu0 %v473
        %544 = vmatpush.bf16.msra.mxu0 %v472
        %545 = vmatpush.bf16.msra.mxu0 %v471
        %546 = vmatpush.bf16.msra.mxu0 %v470
        %547 = vmatpush.bf16.msra.mxu0 %v469
        %548 = vmatpush.bf16.msra.mxu0 %v468
        %549 = vmatmul.bf16.gmra.mxu0 %v365
        %v550 = vpop.f32.mrf.mxu0
        %v551 = vadd.f32 %v502, %v550
        %v552 = vpop.f32.mrf.mxu0
        %v553 = vadd.f32 %v504, %v552
        %554 = vmatmul.bf16.gmra.mxu0 %v367
        %v555 = vpop.f32.mrf.mxu0
        %v556 = vadd.f32 %v507, %v555
        %v557 = vpop.f32.mrf.mxu0
        %v558 = vadd.f32 %v509, %v557
        %559 = vmatmul.bf16.gmra.mxu0 %v369
        %v560 = vpop.f32.mrf.mxu0
        %v561 = vadd.f32 %v512, %v560
        %v562 = vpop.f32.mrf.mxu0
        %v563 = vadd.f32 %v514, %v562
        %564 = vmatmul.bf16.gmra.mxu0 %v371
        %v565 = vpop.f32.mrf.mxu0
        %v566 = vadd.f32 %v517, %v565
        %v567 = vpop.f32.mrf.mxu0
        %v568 = vadd.f32 %v519, %v567
        %569 = vmatmul.bf16.gmra.mxu0 %v373
        %v570 = vpop.f32.mrf.mxu0
        %v571 = vadd.f32 %v522, %v570
        %v572 = vpop.f32.mrf.mxu0
        %v573 = vadd.f32 %v524, %v572
        %574 = vmatmul.bf16.gmra.mxu0 %v375
        %v575 = vpop.f32.mrf.mxu0
        %v576 = vadd.f32 %v527, %v575
        %v577 = vpop.f32.mrf.mxu0
        %v578 = vadd.f32 %v529, %v577
        %579 = vmatmul.bf16.gmra.mxu0 %v377
        %v580 = vpop.f32.mrf.mxu0
        %v581 = vadd.f32 %v532, %v580
        %v582 = vpop.f32.mrf.mxu0
        %v583 = vadd.f32 %v534, %v582
        %584 = vmatmul.bf16.gmra.mxu0 %v379
        %v585 = vpop.f32.mrf.mxu0
        %v586 = vadd.f32 %v537, %v585
        %v587 = vpop.f32.mrf.mxu0
        %v588 = vadd.f32 %v539, %v587
        %589 = vdwg.mxu0
        %v590 = vmax.f32 %v551, 0.0
        %v591 = vmax.f32 %v553, 0.0
        %v592 = vmax.f32 %v556, 0.0
        %v593 = vmax.f32 %v558, 0.0
        %v594 = vmax.f32 %v561, 0.0
        %v595 = vmax.f32 %v563, 0.0
        %v596 = vmax.f32 %v566, 0.0
        %v597 = vmax.f32 %v568, 0.0
        %v598 = vmax.f32 %v571, 0.0
        %v599 = vmax.f32 %v573, 0.0
        %v600 = vmax.f32 %v576, 0.0
        %v601 = vmax.f32 %v578, 0.0
        %v602 = vmax.f32 %v581, 0.0
        %v603 = vmax.f32 %v583, 0.0
        %v604 = vmax.f32 %v586, 0.0
        %v605 = vmax.f32 %v588, 0.0
        %v606 = vld [vmem:[%s3] sm:$0x1]
        %s607 = sld [smem:[#allocation2]]
        %v608 = vstv %s607
        %609 = vmatpush.xpose.msra.mxu0 %v605
        %610 = vmatpush.xpose.msra.mxu0 %v604
        %611 = vmatpush.xpose.msra.mxu0 %v603
        %612 = vmatpush.xpose.msra.mxu0 %v602
        %613 = vmatpush.xpose.msra.mxu0 %v601
        %614 = vmatpush.xpose.msra.mxu0 %v600
        %615 = vmatpush.xpose.msra.mxu0 %v599
        %616 = vmatpush.xpose.msra.mxu0 %v598
        %617 = vmatpush.xpose.msra.mxu0 %v597
        %618 = vmatpush.xpose.msra.mxu0 %v596
        %619 = vmatpush.xpose.msra.mxu0 %v595
        %620 = vmatpush.xpose.msra.mxu0 %v594
        %621 = vmatpush.xpose.msra.mxu0 %v593
        %622 = vmatpush.xpose.msra.mxu0 %v592
        %623 = vmatpush.xpose.msra.mxu0 %v591
        %624 = vmatpush.xpose.msra.mxu0 %v590
        %625 = vmatmul.f32.gmra.mxu0 %v606
        %v626 = vpop.f32.mrf.mxu0
        %v627 = vadd.f32 %v608, %v626
        %628 = vdwg.mxu0
        %629 = vst [vmem:[%s262] sm:$0x1] %v627
        %s630 = sand.u32 %s142, 1
        %s631 = scalar_lea.sflag [#allocation5], %s630
        %s632 = sand.u32 %s142, 1
        %s633 = scalar_lea.vmem [#allocation8], %s632
        // Predicated region
        $region49: #{tpu_custom_call.1} parent=39 // pred_check
          %p634 = pneg %p152
        $region50: #{tpu_custom_call.1} parent=39 // pred_check_branch
          %636 = sbr.rel (%p634) target = $region52
        $region51: #{tpu_custom_call.1} parent=39 // pred_region
          %638 = vsyncadd %s631, 0
          %s639 = scalar_lea.hbm %s5, %s24
          %s641 = sshll.u32 %s633, 4
          %s642 = int_to_ptr.vmem [resolvable:$true] %s641
          %s643 = sshll.u32 %s639, 4
          %s644 = int_to_ptr.hbm [resolvable:$true] %s643
          %646 = dma.vmem_to_hbm [thread:$0]  %s642, 16, %s644, %s631
        $region52: #{tpu_custom_call.1} parent=39 // pred_fallthru
          _
      $region40: #{tpu_custom_call.1} parent=5 // pred_fallthru
        _
      %p647 = scmp.le.s32.totalorder 2, %s19
      // Predicated region
      $region53: #{tpu_custom_call.1} parent=5 // pred_check
        %p648 = pneg %p647
      $region54: #{tpu_custom_call.1} parent=5 // pred_check_branch
        %650 = sbr.rel (%p648) target = $region56
      $region55: #{tpu_custom_call.1} parent=5 // pred_region
        %s651 = ssub.s32 %s19, 2
        // Predicated region
        $region57: #{tpu_custom_call.1} parent=55 // pred_check
          %p652 = pneg %p158
        $region58: #{tpu_custom_call.1} parent=55 // pred_check_branch
          %654 = sbr.rel (%p652) target = $region60
        $region59: #{tpu_custom_call.1} parent=55 // pred_region
          %s655 = sand.u32 %s143, 1
          %s656 = scalar_lea.sflag [#allocation5], %s655
          %s657 = sand.u32 %s143, 1
          %s658 = scalar_lea.vmem [#allocation8], %s657
          %660 = dma.done %s656, 16
        $region60: #{tpu_custom_call.1} parent=55 // pred_fallthru
          _
      $region56: #{tpu_custom_call.1} parent=5 // pred_fallthru
        _
    $region6: #{tpu_custom_call.1} parent=1 // loop_footer
      %s23 = sadd.s32 1, %s19
    $region7: #{tpu_custom_call.1} parent=1 // loop_footer_branch
      %18 = sbr.rel target = $region3
    $region8: #{tpu_custom_call.1} parent=1 // loop_exit
      _
    %661 = vsyncpa [#allocation4], 1
    %s662 = scalar_lea.sflag [#allocation4], 1
    %663 = vsyncpa %s662, 1
    %664 = vsyncpa [#allocation7], 1
    %665 = vsyncpa [#allocation5], 1
    %s666 = scalar_lea.sflag [#allocation5], 1
    %667 = vsyncpa %s666, 1

</llo_original>
